<compile_context>
chip_gen: v7x
topology: tpu7x:2x2x1
jax: 0.10.0
libtpu: 0.0.40
codegen_flags: <defaults>
</compile_context>

<pallas_src>
import functools
import math

import jax
import jax.numpy as jnp
import numpy as np
from jax.experimental import pallas as pl
from jax.experimental.pallas import tpu as pltpu


def _causal_conv1d_kernel(x_ref, w_ref, b_ref, o_ref, halo_ref, *,
                          ksize, b_tile, compute_dtype):
    # x_ref:    (B_TILE, C_in, TILE_L)       current L tile, NCL layout
    # w_ref:    (C_out, ksize*C_in)          fused taps, row index = k*C_in + ci
    # b_ref:    (C_out, 1)
    # o_ref:    (B_TILE, C_out, TILE_L)      lane axis = L (lane-dense store)
    # halo_ref: (B_TILE, C_in, max(pad,1))   last pad input cols of previous tile
    pad = ksize - 1
    tile_l = x_ref.shape[2]

    if pad > 0:
        # First L tile of each batch block: the halo is the causal zero-pad.
        @pl.when(pl.program_id(1) == 0)
        def _():
            halo_ref[...] = jnp.zeros_like(halo_ref)

    w = w_ref[...]
    if compute_dtype is not None:
        w = w.astype(compute_dtype)
    bias = b_ref[...].astype(jnp.float32)          # (C_out, 1), broadcasts over L

    for b in range(b_tile):                        # static unroll over batches
        x_blk = x_ref[b]                           # (C_in, TILE_L)
        if pad > 0:
            x_ext = jnp.concatenate([halo_ref[b], x_blk], axis=1)  # (C_in, TILE_L+pad)
        else:
            x_ext = x_blk

        # im2col over taps on resident VMEM data; row order (k, ci) matches w_ref.
        cols = [x_ext[:, k:k + tile_l] for k in range(ksize)]
        x_all = jnp.concatenate(cols, axis=0) if ksize > 1 else cols[0]
        if compute_dtype is not None:
            x_all = x_all.astype(compute_dtype)

        acc = jnp.dot(w, x_all, preferred_element_type=jnp.float32)  # (C_out, TILE_L)
        acc = acc + bias
        o_ref[b] = acc.astype(o_ref.dtype)

        if pad > 0:
            # Carry the last `pad` input columns for the next L tile.
            halo_ref[b] = x_ext[:, tile_l:tile_l + pad]


def _pick_tile_l(length, c_in, c_out, itemsize):
    # Per-buffer VMEM budget (pipeline double-buffers on top of this); sized so
    # the kernel stays well inside v7x's 32 MiB scoped / 64 MiB physical VMEM.
    budget = 4 * 1024 * 1024
    per_l = (c_in + c_out) * itemsize
    max_l = min(budget // max(per_l, 1), 2048)
    if length <= max_l:
        return length
    return max(128, (max_l // 128) * 128)


def _pick_b_tile(n, c_in, c_out, tile_l, itemsize):
    budget = 8 * 1024 * 1024
    per_b = (c_in + c_out) * tile_l * itemsize
    max_b = max(1, min(8, budget // max(per_b, 1)))
    best = 1
    for cand in range(1, min(n, max_b) + 1):
        if n % cand == 0:
            best = cand
    return best


def causal_conv1d(x, weight, bias=None, *, stride=1, compute_dtype=None, tile_l=None):
    """x: (N, C_in, L); weight: (C_out, C_in, ksize); bias: (C_out,) or None.

    Returns (N, C_out, L_out), L_out = (L-1)//stride + 1, matching
    F.pad(x, (ksize-1, 0)) -> nn.Conv1d(stride=stride).
    """
    n, c_in, length = x.shape
    c_out, c_in_w, ksize = weight.shape
    assert c_in_w == c_in
    pad = ksize - 1

    itemsize = jnp.dtype(x.dtype).itemsize
    if tile_l is None:
        tile_l = _pick_tile_l(length, c_in, c_out, itemsize)
    tile_l = max(1, min(tile_l, length))

    # Right-pad L to a tile multiple (causally safe: extra columns only affect
    # outputs past `length`, which are sliced off below).
    l_padded = ((length + tile_l - 1) // tile_l) * tile_l
    if l_padded != length:
        x = jnp.pad(x, ((0, 0), (0, 0), (0, l_padded - length)))
    num_l = l_padded // tile_l

    b_tile = _pick_b_tile(n, c_in, c_out, tile_l, itemsize)
    num_b = n // b_tile

    # Fused tap weights: [co, k*C_in + ci] = weight[co, ci, k]  (tiny, one-time).
    w_fused = jnp.transpose(weight, (0, 2, 1)).reshape(c_out, ksize * c_in).astype(x.dtype)
    if bias is None:
        bias = jnp.zeros((c_out,), x.dtype)
    b_col = bias.reshape(c_out, 1).astype(x.dtype)

    kernel = functools.partial(_causal_conv1d_kernel, ksize=ksize,
                               b_tile=b_tile, compute_dtype=compute_dtype)

    out_full = pl.pallas_call(
        kernel,
        out_shape=jax.ShapeDtypeStruct((n, c_out, l_padded), x.dtype),
        grid_spec=pltpu.PrefetchScalarGridSpec(
            num_scalar_prefetch=0,
            grid=(num_b, num_l),
            in_specs=[
                pl.BlockSpec((b_tile, c_in, tile_l), lambda nb, lb: (nb, 0, lb)),
                pl.BlockSpec((c_out, ksize * c_in), lambda nb, lb: (0, 0)),
                pl.BlockSpec((c_out, 1), lambda nb, lb: (0, 0)),
            ],
            out_specs=pl.BlockSpec((b_tile, c_out, tile_l), lambda nb, lb: (nb, 0, lb)),
            scratch_shapes=[pltpu.VMEM((b_tile, c_in, max(pad, 1)), x.dtype)],
        ),
        compiler_params=pltpu.CompilerParams(
            dimension_semantics=("parallel", "arbitrary"),
            vmem_limit_bytes=32 * 1024 * 1024,
        ),
    )(x, w_fused, b_col)

    if l_padded != length:
        out_full = out_full[:, :, :length]
    if stride != 1:
        # In-kernel loads stay contiguous / lane-dense; downsample outside.
        out_full = out_full[:, :, ::stride]
    return out_full


def _ref_causal_conv1d(x, weight, bias, *, stride=1):
    # Pure-JAX reference (same semantics as the PyTorch module).
    pad = weight.shape[-1] - 1
    out = jax.lax.conv_general_dilated(
        x, weight, window_strides=(stride,), padding=[(pad, 0)],
        dimension_numbers=("NCH", "OIH", "NCH"))
    return out + bias[None, :, None]


def _make_params(key, c_in, c_out, ksize):
    # PyTorch Conv1d default init: uniform(+-1/sqrt(fan_in)).
    kw, kb = jax.random.split(key)
    fan_in = c_in * ksize
    bound = 1.0 / math.sqrt(fan_in)
    w = jax.random.uniform(kw, (c_out, c_in, ksize), jnp.float32, -bound, bound)
    b = jax.random.uniform(kb, (c_out,), jnp.float32, -bound, bound)
    return w, b


if __name__ == "__main__":
    key = jax.random.PRNGKey(0)
    k0, k1 = jax.random.split(key)

    # 1) Module config: Conv1d(in_planes=4, planes=8, ksize=3, stride=1, bias=True)
    batch, c_in, c_out, ksize, length = 2, 4, 8, 3, 16
    kx, kp = jax.random.split(k0)
    w, b = _make_params(kp, c_in, c_out, ksize)
    x = jax.random.normal(kx, (batch, c_in, length), jnp.float32)

    out = jax.block_until_ready(causal_conv1d(x, w, b, stride=1))
    ref = _ref_causal_conv1d(x, w, b, stride=1)
    assert out.shape == (batch, c_out, length), out.shape
    np.testing.assert_allclose(np.asarray(out), np.asarray(ref), rtol=1e-5, atol=1e-5)

    # 2) stride=2 path (wrapper downsample of lane-dense stride-1 output).
    out2 = jax.block_until_ready(causal_conv1d(x, w, b, stride=2))
    ref2 = _ref_causal_conv1d(x, w, b, stride=2)
    assert out2.shape == (batch, c_out, (length - 1) // 2 + 1), out2.shape
    np.testing.assert_allclose(np.asarray(out2), np.asarray(ref2), rtol=1e-5, atol=1e-5)

    # 3) Larger shape exercising L tiling + halo carry (tile_l=128 < L).
    batch3, c_in3, c_out3, ksize3, length3 = 2, 8, 16, 5, 512
    kx3, kp3 = jax.random.split(k1)
    w3, b3 = _make_params(kp3, c_in3, c_out3, ksize3)
    x3 = jax.random.normal(kx3, (batch3, c_in3, length3), jnp.float32)
    out3 = jax.block_until_ready(causal_conv1d(x3, w3, b3, stride=1, tile_l=128))
    ref3 = _ref_causal_conv1d(x3, w3, b3, stride=1)
    np.testing.assert_allclose(np.asarray(out3), np.asarray(ref3), rtol=1e-4, atol=1e-4)

    # 4) bf16 compute path (v6e/v7x): halves HBM/VMEM traffic, f32 accumulate.
    out4 = jax.block_until_ready(
        causal_conv1d(x3, w3, b3, stride=1, tile_l=128, compute_dtype=jnp.bfloat16))
    np.testing.assert_allclose(np.asarray(out4), np.asarray(ref3), rtol=5e-2, atol=5e-2)

    print("KERNEL_OK")
</pallas_src>

<mosaic_0001>
module attributes {stable_mosaic.version = 11 : i64} {
  func.func @_causal_conv1d_kernel(%arg0: i32, %arg1: i32, %arg2: memref<2x4x16xf32, #tpu.memory_space<vmem>>, %arg3: memref<8x12xf32, #tpu.memory_space<vmem>>, %arg4: memref<8x1xf32, #tpu.memory_space<vmem>>, %arg5: memref<2x8x16xf32, #tpu.memory_space<vmem>>, %arg6: memref<2x4x2xf32, #tpu.memory_space<vmem>>) attributes {dimension_semantics = [#tpu.dimension_semantics<parallel>, #tpu.dimension_semantics<arbitrary>], iteration_bounds = array<i64: 1, 1>, scalar_prefetch = 0 : i64, scratch_operands = 1 : i64, tpu.core_type = #tpu.core_type<tc>, window_params = [{transform_indices = @transform_0, window_bounds = array<i64: 2, 4, 16>}, {pipeline_mode = #tpu.pipeline_mode<synchronous>, transform_indices = @transform_1, window_bounds = array<i64: 8, 12>}, {pipeline_mode = #tpu.pipeline_mode<synchronous>, transform_indices = @transform_2, window_bounds = array<i64: 8, 1>}, {transform_indices = @transform_3, window_bounds = array<i64: 2, 8, 16>}]} {
    %c0_i32 = arith.constant 0 : i32
    %0 = arith.cmpi eq, %arg1, %c0_i32 : i32
    %1 = arith.extui %0 : i1 to i32
    %c0_i32_0 = arith.constant 0 : i32
    %2 = arith.cmpi ne, %1, %c0_i32_0 : i32
    scf.if %2 {
      %cst_28 = arith.constant 0.000000e+00 : f32
      %43 = vector.broadcast %cst_28 : f32 to vector<2x4x2xf32>
      %c0_29 = arith.constant 0 : index
      %c0_30 = arith.constant 0 : index
      %c0_31 = arith.constant 0 : index
      %44 = vector.load %arg6[%c0_29, %c0_30, %c0_31] : memref<2x4x2xf32, #tpu.memory_space<vmem>>, vector<2x4x2xf32>
      tpu.vector_store %arg6[%c0_29, %c0_30, %c0_31], %43 {strides = array<i32>} : memref<2x4x2xf32, #tpu.memory_space<vmem>>, vector<2x4x2xf32>,
    } else {
    }
    %c0 = arith.constant 0 : index
    %c0_1 = arith.constant 0 : index
    %3 = vector.load %arg3[%c0, %c0_1] : memref<8x12xf32, #tpu.memory_space<vmem>>, vector<8x12xf32>
    %c0_2 = arith.constant 0 : index
    %c0_3 = arith.constant 0 : index
    %4 = vector.load %arg4[%c0_2, %c0_3] : memref<8x1xf32, #tpu.memory_space<vmem>>, vector<8x1xf32>
    %c0_4 = arith.constant 0 : index
    %c0_5 = arith.constant 0 : index
    %c0_6 = arith.constant 0 : index
    %5 = vector.load %arg2[%c0_4, %c0_5, %c0_6] : memref<2x4x16xf32, #tpu.memory_space<vmem>>, vector<1x4x16xf32>
    %6 = vector.shape_cast %5 : vector<1x4x16xf32> to vector<4x16xf32>
    %c0_7 = arith.constant 0 : index
    %c0_8 = arith.constant 0 : index
    %c0_9 = arith.constant 0 : index
    %7 = vector.load %arg6[%c0_7, %c0_8, %c0_9] : memref<2x4x2xf32, #tpu.memory_space<vmem>>, vector<1x4x2xf32>
    %8 = vector.shape_cast %7 : vector<1x4x2xf32> to vector<4x2xf32>
    %9 = tpu.concatenate %8, %6 in 1 : vector<4x2xf32>, vector<4x16xf32> -> vector<4x18xf32>
    %10 = vector.extract_strided_slice %9 {offsets = [0, 0], sizes = [4, 16], strides = [1, 1]} : vector<4x18xf32> to vector<4x16xf32>
    %11 = vector.extract_strided_slice %9 {offsets = [0, 1], sizes = [4, 16], strides = [1, 1]} : vector<4x18xf32> to vector<4x16xf32>
    %12 = vector.extract_strided_slice %9 {offsets = [0, 2], sizes = [4, 16], strides = [1, 1]} : vector<4x18xf32> to vector<4x16xf32>
    %13 = tpu.concatenate %10, %11, %12 in 0 : vector<4x16xf32>, vector<4x16xf32>, vector<4x16xf32> -> vector<12x16xf32>
    %cst = arith.constant dense<0.000000e+00> : vector<8x16xf32>
    %14 = tpu.matmul %3, %13, %cst {dimension_numbers = #tpu.dot_dimension_numbers<[1], [0], [0], [1], [0, 0, 1, 1], [], []>} : vector<8x12xf32>, vector<12x16xf32>, vector<8x16xf32> -> vector<8x16xf32>
    %15 = vector.broadcast %4 : vector<8x1xf32> to vector<8x16xf32>
    %16 = arith.addf %14, %15 : vector<8x16xf32>
    %c0_10 = arith.constant 0 : index
    %c0_11 = arith.constant 0 : index
    %c0_12 = arith.constant 0 : index
    %17 = vector.load %arg5[%c0_10, %c0_11, %c0_12] : memref<2x8x16xf32, #tpu.memory_space<vmem>>, vector<1x8x16xf32>
    %18 = vector.shape_cast %17 : vector<1x8x16xf32> to vector<8x16xf32>
    %19 = vector.shape_cast %16 : vector<8x16xf32> to vector<1x8x16xf32>
    tpu.vector_store %arg5[%c0_10, %c0_11, %c0_12], %19 {strides = array<i32>} : memref<2x8x16xf32, #tpu.memory_space<vmem>>, vector<1x8x16xf32>,
    %20 = vector.extract_strided_slice %9 {offsets = [0, 16], sizes = [4, 2], strides = [1, 1]} : vector<4x18xf32> to vector<4x2xf32>
    %c0_13 = arith.constant 0 : index
    %c0_14 = arith.constant 0 : index
    %c0_15 = arith.constant 0 : index
    %21 = vector.load %arg6[%c0_13, %c0_14, %c0_15] : memref<2x4x2xf32, #tpu.memory_space<vmem>>, vector<1x4x2xf32>
    %22 = vector.shape_cast %21 : vector<1x4x2xf32> to vector<4x2xf32>
    %23 = vector.shape_cast %20 : vector<4x2xf32> to vector<1x4x2xf32>
    tpu.vector_store %arg6[%c0_13, %c0_14, %c0_15], %23 {strides = array<i32>} : memref<2x4x2xf32, #tpu.memory_space<vmem>>, vector<1x4x2xf32>,
    %c1 = arith.constant 1 : index
    %c0_16 = arith.constant 0 : index
    %c0_17 = arith.constant 0 : index
    %24 = vector.load %arg2[%c1, %c0_16, %c0_17] : memref<2x4x16xf32, #tpu.memory_space<vmem>>, vector<1x4x16xf32>
    %25 = vector.shape_cast %24 : vector<1x4x16xf32> to vector<4x16xf32>
    %c1_18 = arith.constant 1 : index
    %c0_19 = arith.constant 0 : index
    %c0_20 = arith.constant 0 : index
    %26 = vector.load %arg6[%c1_18, %c0_19, %c0_20] : memref<2x4x2xf32, #tpu.memory_space<vmem>>, vector<1x4x2xf32>
    %27 = vector.shape_cast %26 : vector<1x4x2xf32> to vector<4x2xf32>
    %28 = tpu.concatenate %27, %25 in 1 : vector<4x2xf32>, vector<4x16xf32> -> vector<4x18xf32>
    %29 = vector.extract_strided_slice %28 {offsets = [0, 0], sizes = [4, 16], strides = [1, 1]} : vector<4x18xf32> to vector<4x16xf32>
    %30 = vector.extract_strided_slice %28 {offsets = [0, 1], sizes = [4, 16], strides = [1, 1]} : vector<4x18xf32> to vector<4x16xf32>
    %31 = vector.extract_strided_slice %28 {offsets = [0, 2], sizes = [4, 16], strides = [1, 1]} : vector<4x18xf32> to vector<4x16xf32>
    %32 = tpu.concatenate %29, %30, %31 in 0 : vector<4x16xf32>, vector<4x16xf32>, vector<4x16xf32> -> vector<12x16xf32>
    %cst_21 = arith.constant dense<0.000000e+00> : vector<8x16xf32>
    %33 = tpu.matmul %3, %32, %cst_21 {dimension_numbers = #tpu.dot_dimension_numbers<[1], [0], [0], [1], [0, 0, 1, 1], [], []>} : vector<8x12xf32>, vector<12x16xf32>, vector<8x16xf32> -> vector<8x16xf32>
    %34 = vector.broadcast %4 : vector<8x1xf32> to vector<8x16xf32>
    %35 = arith.addf %33, %34 : vector<8x16xf32>
    %c1_22 = arith.constant 1 : index
    %c0_23 = arith.constant 0 : index
    %c0_24 = arith.constant 0 : index
    %36 = vector.load %arg5[%c1_22, %c0_23, %c0_24] : memref<2x8x16xf32, #tpu.memory_space<vmem>>, vector<1x8x16xf32>
    %37 = vector.shape_cast %36 : vector<1x8x16xf32> to vector<8x16xf32>
    %38 = vector.shape_cast %35 : vector<8x16xf32> to vector<1x8x16xf32>
    tpu.vector_store %arg5[%c1_22, %c0_23, %c0_24], %38 {strides = array<i32>} : memref<2x8x16xf32, #tpu.memory_space<vmem>>, vector<1x8x16xf32>,
    %39 = vector.extract_strided_slice %28 {offsets = [0, 16], sizes = [4, 2], strides = [1, 1]} : vector<4x18xf32> to vector<4x2xf32>
    %c1_25 = arith.constant 1 : index
    %c0_26 = arith.constant 0 : index
    %c0_27 = arith.constant 0 : index
    %40 = vector.load %arg6[%c1_25, %c0_26, %c0_27] : memref<2x4x2xf32, #tpu.memory_space<vmem>>, vector<1x4x2xf32>
    %41 = vector.shape_cast %40 : vector<1x4x2xf32> to vector<4x2xf32>
    %42 = vector.shape_cast %39 : vector<4x2xf32> to vector<1x4x2xf32>
    tpu.vector_store %arg6[%c1_25, %c0_26, %c0_27], %42 {strides = array<i32>} : memref<2x4x2xf32, #tpu.memory_space<vmem>>, vector<1x4x2xf32>,
    return
  }
  func.func @transform_0(%arg0: i32, %arg1: i32) -> (i32, i32, i32) {
    %c0_i32 = arith.constant 0 : i32
    %c0_i32_0 = arith.constant 0 : i32
    return %arg0, %c0_i32, %arg1 : i32, i32, i32
  }
  func.func @transform_1(%arg0: i32, %arg1: i32) -> (i32, i32) {
    %c0_i32 = arith.constant 0 : i32
    %c0_i32_0 = arith.constant 0 : i32
    %c0_i32_1 = arith.constant 0 : i32
    return %c0_i32, %c0_i32_0 : i32, i32
  }
  func.func @transform_2(%arg0: i32, %arg1: i32) -> (i32, i32) {
    %c0_i32 = arith.constant 0 : i32
    %c0_i32_0 = arith.constant 0 : i32
    %c0_i32_1 = arith.constant 0 : i32
    return %c0_i32, %c0_i32_0 : i32, i32
  }
  func.func @transform_3(%arg0: i32, %arg1: i32) -> (i32, i32, i32) {
    %c0_i32 = arith.constant 0 : i32
    %c0_i32_0 = arith.constant 0 : i32
    return %arg0, %c0_i32, %arg1 : i32, i32, i32
  }
}

</mosaic_0001>

<llo_original>
// kernel: tpu_custom_call.1
$region0: #{tpu_custom_call.1}
  #allocation0 [shape = 'u32[]', space=smem, size = 0x4, offset = 0x4, fixed_abs, tag = 'smem constant byte address 0x4 - core index']
  #allocation1 [shape = 'u32[144,128]{1,0:T(1,128)}', space=vmem, size = 0x12000, scoped, tag = 'internal scratch']
  #allocation2 [shape = 'f32[2,4,2]{2,1,0:T(4,128)}', space=vmem, size = 0x1000, scoped, tag = 'scratch operand']
  %s0 = inlined_call_operand.vmem [shape: f32[2,4,16], index: 0, kind: input, shape index: {}]
  %s1 = inlined_call_operand.hbm [shape: f32[8,12], index: 1, kind: input, shape index: {}]
  %s2 = inlined_call_operand.vmem [shape: f32[8,1], index: 2, kind: input, shape index: {}]
  %s3 = inlined_call_operand.hbm [shape: f32[2,8,16], index: 3, kind: output, shape index: {}]
  %s4 = sld [smem:[#allocation0]]
  $region30: #{tpu_custom_call.1} parent=0
    _
  %s6 = ssub.s32 1, %s4
  %s7 = scalar_select 0, %s6, %s4
  $region1: #{tpu_custom_call.1} parent=0
    #allocation3 [shape = 'u8[4096]{0}', space=vmem, size = 0x1000, scoped, tag = 'input window, operand 1, single buffered']
    #allocation4 [shape = 's32[1]{0}', space=sflag, size = 0x4, scoped, tag = 'scoped memory for tpu_custom_call.1']
    #allocation5 [shape = 's32[1]{0}', space=sflag, size = 0x4, scoped, tag = 'scoped memory for tpu_custom_call.1']
    #allocation6 [shape = 'u8[8192]{0}', space=vmem, size = 0x2000, scoped, tag = 'output window, operand 0, single buffered']
    %8 = vsyncpa [#allocation4], 0
    %9 = vsyncpa [#allocation5], 0
    // Predicated region
    $region2: #{tpu_custom_call.1} parent=1 // pred_check
      _
    $region3: #{tpu_custom_call.1} parent=1 // pred_check_branch
      %11 = sbr.rel (0) target = $region5
    $region4: #{tpu_custom_call.1} parent=1 // pred_region
      _
    $region5: #{tpu_custom_call.1} parent=1 // pred_fallthru
      _
    // Predicated region
    $region6: #{tpu_custom_call.1} parent=1 // pred_check
      _
    $region7: #{tpu_custom_call.1} parent=1 // pred_check_branch
      %13 = sbr.rel (0) target = $region9
    $region8: #{tpu_custom_call.1} parent=1 // pred_region
      %s15 = ssub.s32 128, 128
      %16 = vsyncadd [#allocation4], %s15
      %s18 = sshll.u32 [#allocation3], 4
      %s19 = int_to_ptr.vmem [resolvable:$true] %s18
      %21 = dma.hbm_to_vmem [thread:$0]  %s1, 128, %s19, [#allocation4]
    $region9: #{tpu_custom_call.1} parent=1 // pred_fallthru
      _
    // Predicated region
    $region10: #{tpu_custom_call.1} parent=1 // pred_check
      _
    $region11: #{tpu_custom_call.1} parent=1 // pred_check_branch
      %23 = sbr.rel (0) target = $region13
    $region12: #{tpu_custom_call.1} parent=1 // pred_region
      _
    $region13: #{tpu_custom_call.1} parent=1 // pred_fallthru
      _
    // Predicated region
    $region14: #{tpu_custom_call.1} parent=1 // pred_check
      _
    $region15: #{tpu_custom_call.1} parent=1 // pred_check_branch
      %25 = sbr.rel (0) target = $region17
    $region16: #{tpu_custom_call.1} parent=1 // pred_region
      %26 = dma.done [#allocation4], 128
    $region17: #{tpu_custom_call.1} parent=1 // pred_fallthru
      _
    %p27 = scmp.eq.s32.totalorder 0, 0
    // Predicated region
    $region18: #{tpu_custom_call.1} parent=1 // pred_check
      %p28 = pneg %p27
    $region19: #{tpu_custom_call.1} parent=1 // pred_check_branch
      %30 = sbr.rel (%p28) target = $region21
    $region20: #{tpu_custom_call.1} parent=1 // pred_region
      %vm31 = vcmask 11264
      %32 = vst.msk [vmem:[#allocation2] sm:$0xf] %vm31, 0.0
      %33 = vst.msk [vmem:[#allocation2 + $0x4] sm:$0xf] %vm31, 0.0
    $region21: #{tpu_custom_call.1} parent=1 // pred_fallthru
      _
    %v34 = vld [vmem:[#allocation3] sm:$0xff]
    %v35 = vld [vmem:[%s2] sm:$0xff]
    %v36 = vld [vmem:[%s0] sm:$0xf]
    %v37 = vld [vmem:[#allocation2] sm:$0xf]
    %39 = vrot.lane.b32.xlu0 %v36, 2
    %v40 = vpop.permute.xlu0 %39
    %vm42 = vcmask 15360
    %v43 = vsel %vm42, %v37, %v40
    %v45 = vrot.slane %v43, 4
    %46 = vrot.lane.b32.xlu0 %v45, 127
    %v47 = vpop.permute.xlu0 %46
    %49 = vrot.lane.b32.xlu0 %v43, 126
    %v50 = vpop.permute.xlu0 %49
    %vm51 = vcmask 1043456
    %v52 = vsel %vm51, %v43, %v47
    %54 = vset.pattern.permute.xlu0 0
    %55 = vperm.xlu0 %54, %v35
    %v56 = vpop.permute.xlu0 %55
    %vm58 = vcmask 97280
    %v60 = vsel %vm58, %v34, 0
    %v62 = vsel %vm51, %v50, 0
    %64 = vmatprep.subr.mxu0 0.0
    %65 = vmatpush1.msra.mxu0 %v52
    %66 = vmatprep.subr.mxu0 0.0
    %67 = vmatpush1.msra.mxu0 %v62
    %68 = vmatprep.subr.mxu0 0.0
    %69 = vmatpush1.msra.mxu0 0.0
    %70 = vmatprep.subr.mxu0 0.0
    %71 = vmatpush1.msra.mxu0 0.0
    %72 = vmatprep.subr.mxu0 0.0
    %73 = vmatpush1.msra.mxu0 0.0
    %74 = vmatprep.subr.mxu0 0.0
    %75 = vmatpush1.msra.mxu0 0.0
    %76 = vmatprep.subr.mxu0 0.0
    %77 = vmatpush1.msra.mxu0 0.0
    %78 = vmatprep.subr.mxu0 0.0
    %79 = vmatpush1.msra.mxu0 0.0
    %80 = vmatprep.subr.mxu0 0.0
    %81 = vmatpush1.msra.mxu0 0.0
    %82 = vmatprep.subr.mxu0 0.0
    %83 = vmatpush1.msra.mxu0 0.0
    %84 = vmatprep.subr.mxu0 0.0
    %85 = vmatpush1.msra.mxu0 0.0
    %86 = vmatprep.subr.mxu0 0.0
    %87 = vmatpush1.msra.mxu0 0.0
    %88 = vmatprep.subr.mxu0 0.0
    %89 = vmatpush1.msra.mxu0 0.0
    %90 = vmatprep.subr.mxu0 0.0
    %91 = vmatpush1.msra.mxu0 0.0
    %92 = vmatprep.subr.mxu0 0.0
    %93 = vmatpush1.msra.mxu0 0.0
    %94 = vmatprep.subr.mxu0 0.0
    %95 = vmatpush1.msra.mxu0 0.0
    %96 = vmatprep.subr.mxu0 0.0
    %97 = vmatpush1.msra.mxu0 0.0
    %98 = vmatprep.subr.mxu0 0.0
    %99 = vmatpush1.msra.mxu0 0.0
    %100 = vmatprep.subr.mxu0 0.0
    %101 = vmatpush1.msra.mxu0 0.0
    %102 = vmatprep.subr.mxu0 0.0
    %103 = vmatpush1.msra.mxu0 0.0
    %104 = vmatprep.subr.mxu0 0.0
    %105 = vmatpush1.msra.mxu0 0.0
    %106 = vmatprep.subr.mxu0 0.0
    %107 = vmatpush1.msra.mxu0 0.0
    %108 = vmatprep.subr.mxu0 0.0
    %109 = vmatpush1.msra.mxu0 0.0
    %110 = vmatprep.subr.mxu0 0.0
    %111 = vmatpush1.msra.mxu0 0.0
    %112 = vmatprep.subr.mxu0 0.0
    %113 = vmatpush1.msra.mxu0 0.0
    %114 = vmatprep.subr.mxu0 0.0
    %115 = vmatpush1.msra.mxu0 0.0
    %116 = vmatprep.subr.mxu0 0.0
    %117 = vmatpush1.msra.mxu0 0.0
    %118 = vmatprep.subr.mxu0 0.0
    %119 = vmatpush1.msra.mxu0 0.0
    %120 = vmatprep.subr.mxu0 0.0
    %121 = vmatpush1.msra.mxu0 0.0
    %122 = vmatprep.subr.mxu0 0.0
    %123 = vmatpush1.msra.mxu0 0.0
    %124 = vmatprep.subr.mxu0 0.0
    %125 = vmatpush1.msra.mxu0 0.0
    %126 = vmatprep.subr.mxu0 0.0
    %127 = vmatpush1.msra.mxu0 0.0
    %128 = vmatprep.mubr.f32.mxu0 0.0
    %129 = vmatmul.mubr.f32.gmra.mrb[0].mxu0 %v60
    %v130 = vpop.f32.mrb[0].mxu0
    %v131 = vadd.f32 %v56, %v130
    %v132 = vpop.f32.mrb[0].mxu0
    %133 = vdwg.mxu0
    %vm134 = vcmask 130048
    %135 = vst.msk [vmem:[#allocation6] sm:$0xff] %vm134, %v131
    %136 = vrot.lane.b32.xlu0 %v43, 112
    %v137 = vpop.permute.xlu0 %136
    %vm139 = vcmask 11264
    %140 = vst.msk [vmem:[#allocation2] sm:$0xf] %vm139, %v137
    %s141 = scalar_lea.vmem %s0, 4
    %v142 = vld [vmem:[%s141] sm:$0xf]
    %s143 = scalar_lea.vmem [#allocation2], 4
    %v144 = vld [vmem:[%s143] sm:$0xf]
    %146 = vrot.lane.b32.xlu0 %v142, 2
    %v147 = vpop.permute.xlu0 %146
    %v149 = vsel %vm42, %v144, %v147
    %v151 = vrot.slane %v149, 4
    %152 = vrot.lane.b32.xlu0 %v151, 127
    %v153 = vpop.permute.xlu0 %152
    %155 = vrot.lane.b32.xlu0 %v149, 126
    %v156 = vpop.permute.xlu0 %155
    %v157 = vsel %vm51, %v149, %v153
    %v158 = vsel %vm51, %v156, 0
    %160 = vmatprep.subr.mxu0 0.0
    %161 = vmatpush1.msra.mxu0 %v157
    %162 = vmatprep.subr.mxu0 0.0
    %163 = vmatpush1.msra.mxu0 %v158
    %164 = vmatprep.subr.mxu0 0.0
    %165 = vmatpush1.msra.mxu0 0.0
    %166 = vmatprep.subr.mxu0 0.0
    %167 = vmatpush1.msra.mxu0 0.0
    %168 = vmatprep.subr.mxu0 0.0
    %169 = vmatpush1.msra.mxu0 0.0
    %170 = vmatprep.subr.mxu0 0.0
    %171 = vmatpush1.msra.mxu0 0.0
    %172 = vmatprep.subr.mxu0 0.0
    %173 = vmatpush1.msra.mxu0 0.0
    %174 = vmatprep.subr.mxu0 0.0
    %175 = vmatpush1.msra.mxu0 0.0
    %176 = vmatprep.subr.mxu0 0.0
    %177 = vmatpush1.msra.mxu0 0.0
    %178 = vmatprep.subr.mxu0 0.0
    %179 = vmatpush1.msra.mxu0 0.0
    %180 = vmatprep.subr.mxu0 0.0
    %181 = vmatpush1.msra.mxu0 0.0
    %182 = vmatprep.subr.mxu0 0.0
    %183 = vmatpush1.msra.mxu0 0.0
    %184 = vmatprep.subr.mxu0 0.0
    %185 = vmatpush1.msra.mxu0 0.0
    %186 = vmatprep.subr.mxu0 0.0
    %187 = vmatpush1.msra.mxu0 0.0
    %188 = vmatprep.subr.mxu0 0.0
    %189 = vmatpush1.msra.mxu0 0.0
    %190 = vmatprep.subr.mxu0 0.0
    %191 = vmatpush1.msra.mxu0 0.0
    %192 = vmatprep.subr.mxu0 0.0
    %193 = vmatpush1.msra.mxu0 0.0
    %194 = vmatprep.subr.mxu0 0.0
    %195 = vmatpush1.msra.mxu0 0.0
    %196 = vmatprep.subr.mxu0 0.0
    %197 = vmatpush1.msra.mxu0 0.0
    %198 = vmatprep.subr.mxu0 0.0
    %199 = vmatpush1.msra.mxu0 0.0
    %200 = vmatprep.subr.mxu0 0.0
    %201 = vmatpush1.msra.mxu0 0.0
    %202 = vmatprep.subr.mxu0 0.0
    %203 = vmatpush1.msra.mxu0 0.0
    %204 = vmatprep.subr.mxu0 0.0
    %205 = vmatpush1.msra.mxu0 0.0
    %206 = vmatprep.subr.mxu0 0.0
    %207 = vmatpush1.msra.mxu0 0.0
    %208 = vmatprep.subr.mxu0 0.0
    %209 = vmatpush1.msra.mxu0 0.0
    %210 = vmatprep.subr.mxu0 0.0
    %211 = vmatpush1.msra.mxu0 0.0
    %212 = vmatprep.subr.mxu0 0.0
    %213 = vmatpush1.msra.mxu0 0.0
    %214 = vmatprep.subr.mxu0 0.0
    %215 = vmatpush1.msra.mxu0 0.0
    %216 = vmatprep.subr.mxu0 0.0
    %217 = vmatpush1.msra.mxu0 0.0
    %218 = vmatprep.subr.mxu0 0.0
    %219 = vmatpush1.msra.mxu0 0.0
    %220 = vmatprep.subr.mxu0 0.0
    %221 = vmatpush1.msra.mxu0 0.0
    %222 = vmatprep.subr.mxu0 0.0
    %223 = vmatpush1.msra.mxu0 0.0
    %224 = vmatprep.mubr.f32.mxu0 0.0
    %225 = vmatmul.mubr.f32.gmra.mrb[0].mxu0 %v60
    %v226 = vpop.f32.mrb[0].mxu0
    %v227 = vadd.f32 %v56, %v226
    %v228 = vpop.f32.mrb[0].mxu0
    %229 = vdwg.mxu0
    %s230 = scalar_lea.vmem [#allocation6], 8
    %231 = vst.msk [vmem:[%s230] sm:$0xff] %vm134, %v227
    %232 = vrot.lane.b32.xlu0 %v149, 112
    %v233 = vpop.permute.xlu0 %232
    %235 = vst.msk [vmem:[%s143] sm:$0xf] %vm139, %v233
    // Predicated region
    $region22: #{tpu_custom_call.1} parent=1 // pred_check
      _
    $region23: #{tpu_custom_call.1} parent=1 // pred_check_branch
      %237 = sbr.rel (0) target = $region25
    $region24: #{tpu_custom_call.1} parent=1 // pred_region
      %s239 = ssub.s32 256, 256
      %240 = vsyncadd [#allocation5], %s239
      %s241 = sshll.u32 [#allocation6], 4
      %s242 = int_to_ptr.vmem [resolvable:$true] %s241
      %247 = dma.vmem_to_hbm [thread:$0]  %s242, 256, %s3, [#allocation5], 128, 128, 8
    $region25: #{tpu_custom_call.1} parent=1 // pred_fallthru
      _
    // Predicated region
    $region26: #{tpu_custom_call.1} parent=1 // pred_check
      _
    $region27: #{tpu_custom_call.1} parent=1 // pred_check_branch
      %249 = sbr.rel (0) target = $region29
    $region28: #{tpu_custom_call.1} parent=1 // pred_region
      %250 = dma.done [#allocation5], 256
    $region29: #{tpu_custom_call.1} parent=1 // pred_fallthru
      _
    %251 = vsyncpa [#allocation4], 1
    %252 = vsyncpa [#allocation5], 1

</llo_original>
